<compile_context>
chip_gen: v5e
topology: v5e:2x2
jax: 0.10.0
libtpu: 0.0.40
codegen_flags: <defaults>
</compile_context>

<pallas_src>
import numpy as np
import jax
import jax.numpy as jnp
from jax.experimental import pallas as pl
from jax.experimental.pallas import tpu as pltpu

# ----- small hyperparameters consistent with the WaveToSpec constructor (scaled down) -----
SAMPLE_RATE = 4000
WINDOW_SIZE = 64          # n_fft == win_length
HOP_SIZE = 16             # n_fft / hop == 4 (same ratio as the real 2048/512 config)
MEL_BINS = 16
FMIN = 50
FMAX = 1800
IMG_SIZE = 32
AMIN = 1e-10
REF = 1.0
BN_EPS = 1e-5
FREQ_BINS = WINDOW_SIZE // 2 + 1
LANES = 128               # lane-dense padding width for all matmul N/K dims


# -------------------- deterministic parameter construction --------------------
def _hann_window(n):
    # periodic Hann (fftbins=True), as used by librosa / torchlibrosa
    return 0.5 - 0.5 * np.cos(2.0 * np.pi * np.arange(n) / n)


def _hz_to_mel(f):
    f = np.asarray(f, dtype=np.float64)
    f_sp = 200.0 / 3
    mels = f / f_sp
    min_log_hz = 1000.0
    min_log_mel = min_log_hz / f_sp
    logstep = np.log(6.4) / 27.0
    return np.where(f >= min_log_hz,
                    min_log_mel + np.log(np.maximum(f, min_log_hz) / min_log_hz) / logstep,
                    mels)


def _mel_to_hz(m):
    m = np.asarray(m, dtype=np.float64)
    f_sp = 200.0 / 3
    freqs = f_sp * m
    min_log_hz = 1000.0
    min_log_mel = min_log_hz / f_sp
    logstep = np.log(6.4) / 27.0
    return np.where(m >= min_log_mel,
                    min_log_hz * np.exp(logstep * (m - min_log_mel)),
                    freqs)


def _mel_filterbank(sr, n_fft, n_mels, fmin, fmax):
    # librosa.filters.mel(htk=False, norm='slaney').T  -> (n_fft//2+1, n_mels)
    n_freqs = n_fft // 2 + 1
    fftfreqs = np.linspace(0.0, sr / 2.0, n_freqs)
    mel_f = _mel_to_hz(np.linspace(_hz_to_mel(fmin), _hz_to_mel(fmax), n_mels + 2))
    fdiff = np.diff(mel_f)
    ramps = mel_f[:, None] - fftfreqs[None, :]
    weights = np.zeros((n_mels, n_freqs))
    for i in range(n_mels):
        lower = -ramps[i] / fdiff[i]
        upper = ramps[i + 2] / fdiff[i + 1]
        weights[i] = np.maximum(0.0, np.minimum(lower, upper))
    enorm = 2.0 / (mel_f[2:n_mels + 2] - mel_f[:n_mels])
    weights *= enorm[:, None]
    return weights.T.astype(np.float32)


def _dft_weights(n_fft):
    # torchlibrosa STFT conv kernels: windowed DFT rows for bins 0..n_fft//2
    n_out = n_fft // 2 + 1
    ang = -2.0 * np.pi * np.outer(np.arange(n_fft), np.arange(n_out)) / n_fft
    win = _hann_window(n_fft)[:, None]
    return (np.cos(ang) * win).astype(np.float32), (np.sin(ang) * win).astype(np.float32)


def build_params():
    """Lane-dense, fused, constant-folded parameters (built once in numpy)."""
    assert 2 * FREQ_BINS <= LANES and IMG_SIZE <= LANES
    w_real, w_imag = _dft_weights(WINDOW_SIZE)                    # (n_fft, F) each
    w_comb = np.zeros((WINDOW_SIZE, LANES), np.float32)           # [ real | imag | 0 ]
    w_comb[:, :FREQ_BINS] = w_real
    w_comb[:, FREQ_BINS:2 * FREQ_BINS] = w_imag

    mel = _mel_filterbank(SAMPLE_RATE, WINDOW_SIZE, MEL_BINS, FMIN, FMAX)  # (F, mel)
    # Fold the MonoToColor frequency-axis nearest upsample (mel -> IMG_SIZE rows)
    # directly into the mel matrix columns: out row i <- mel bin floor(i*mel/IMG).
    rows = (np.arange(IMG_SIZE) * MEL_BINS) // IMG_SIZE
    mel_img = np.zeros((LANES, LANES), np.float32)                # mel(power) = mel(re^2)+mel(im^2)
    mel_img[:FREQ_BINS, :IMG_SIZE] = mel[:, rows]
    mel_img[FREQ_BINS:2 * FREQ_BINS, :IMG_SIZE] = mel[:, rows]

    # bn0 (eval): weight=1, bias=0, running_mean=0, running_var=1; fold in -10*log10(ref),
    # and replicate per folded image row (per-channel affine commutes with nearest repeat).
    gamma, beta, r_mean, r_var = 1.0, 0.0, 0.0, 1.0
    s = gamma / np.sqrt(r_var + BN_EPS)
    b = beta - r_mean * s - 10.0 * np.log10(max(AMIN, REF)) * s
    bn_scale = np.zeros((1, LANES), np.float32)
    bn_bias = np.zeros((1, LANES), np.float32)
    bn_scale[0, :IMG_SIZE] = s
    bn_bias[0, :IMG_SIZE] = b

    # bf16 DFT weight = MXU fast path on v6e/v7x (accumulation stays f32 in-kernel);
    # mel/BN stay f32 so all post-MXU elementwise math is f32 (v5e friendly).
    return (jnp.asarray(w_comb, dtype=jnp.bfloat16),
            jnp.asarray(mel_img),
            jnp.asarray(bn_scale),
            jnp.asarray(bn_bias))


# ------------------------------ Pallas kernel ------------------------------
def _round_up(x, m):
    return ((x + m - 1) // m) * m


def _make_kernel(tile_t, ratio, extra_rows):
    def kernel(wave_ref, wcomb_ref, mel_ref, scale_ref, bias_ref, out_ref):
        # wave_ref is the whole per-batch slab of hop-sized rows: (R, HOP).
        row0 = pl.multiple_of(pl.program_id(1) * tile_t, 8)
        w2d = wave_ref[pl.ds(row0, tile_t + extra_rows), :]            # aligned (tile_t+8, hop)
        # Build overlapping STFT frames in VMEM: frame i = hop-rows [i .. i+ratio-1].
        frames = jnp.concatenate(
            [w2d[c:c + tile_t, :] for c in range(ratio)], axis=1)      # (tile_t, n_fft)
        # Fused windowed-DFT (real | imag stacked along lanes), lane-dense K/N.
        comb = jnp.dot(frames.astype(wcomb_ref.dtype), wcomb_ref[...],
                       preferred_element_type=jnp.float32)             # (tile_t, 128)
        power = comb * comb                                            # Spectrogram (power=2)
        melspec = jnp.dot(power, mel_ref[...],
                          preferred_element_type=jnp.float32)          # (tile_t, 128): [img rows | 0]
        logmel = 10.0 * jnp.log10(jnp.maximum(melspec, AMIN))          # power_to_db (top_db=None)
        out_ref[...] = logmel * scale_ref[...] + bias_ref[...]         # bn0(eval) + ref offset folded
    return kernel


def wave_to_spec(wave, w_comb, mel_img, bn_scale, bn_bias, *, tile_t=256):
    """wave: (B, L) float32 -> (img (B,3,IMG_SIZE,W), frames_num); eval-mode WaveToSpec.forward."""
    B, L = wave.shape
    n_fft, hop = WINDOW_SIZE, HOP_SIZE
    assert n_fft % hop == 0
    ratio = n_fft // hop                                   # 4
    pad = n_fft // 2

    x = jnp.pad(wave, ((0, 0), (pad, pad)), mode='reflect')            # center / reflect pad
    Lp = x.shape[1]
    T = (Lp - n_fft) // hop + 1                                        # STFT frames per batch

    tile_t = min(tile_t, _round_up(T, 8))                              # big-but-fitting M tile
    T_pad = _round_up(T, tile_t)
    n_tblk = T_pad // tile_t
    extra_rows = _round_up(ratio - 1, 8) if ratio > 1 else 0           # 8
    R = T_pad + extra_rows                                             # hop-rows per batch
    x = jnp.pad(x, ((0, 0), (0, R * hop - Lp)))                        # zero tail (padded frames unused)
    wave2d = x.reshape(B * R, hop)                                     # contiguous hop-sized rows

    out = pl.pallas_call(
        _make_kernel(tile_t, ratio, extra_rows),
        out_shape=jax.ShapeDtypeStruct((B * T_pad, LANES), jnp.float32),
        grid_spec=pltpu.PrefetchScalarGridSpec(
            num_scalar_prefetch=0,
            grid=(B, n_tblk),
            in_specs=[
                # Per-batch wave slab; index map ignores t -> DMA'd once per batch (1x traffic).
                pl.BlockSpec((R, hop), lambda b, t: (b, 0)),
                # Fixed weights: constant index maps (stay resident across grid steps).
                pl.BlockSpec((n_fft, LANES), lambda b, t: (0, 0)),
                pl.BlockSpec((LANES, LANES), lambda b, t: (0, 0)),
                pl.BlockSpec((1, LANES), lambda b, t: (0, 0)),
                pl.BlockSpec((1, LANES), lambda b, t: (0, 0)),
            ],
            # Lane-dense (tile_t, 128) output blocks; image rows sliced out in the wrapper.
            out_specs=pl.BlockSpec((tile_t, LANES), lambda b, t: (b * n_tblk + t, 0)),
        ),
        compiler_params=pltpu.CompilerParams(
            dimension_semantics=("parallel", "parallel")),
    )(wave2d, w_comb, mel_img, bn_scale, bn_bias)

    # Kernel output already contains bn0 + freq-axis nearest resize baked in:
    # lanes [0:IMG_SIZE) are the IMG_SIZE spectrogram image rows per time frame.
    spec = jnp.transpose(out.reshape(B, T_pad, LANES)[:, :T, :IMG_SIZE],
                         (0, 2, 1))                                    # (B, IMG_SIZE, T)

    # MonoToColor time axis: interpolate width T -> int(T * IMG_SIZE / MEL_BINS), nearest.
    out_h = IMG_SIZE
    out_w = (T * IMG_SIZE) // MEL_BINS
    if out_w % T == 0:                                                 # exact integer ratio -> repeat
        img1 = jnp.repeat(spec, out_w // T, axis=2)
    else:                                                              # general nearest fallback
        cols = ((jnp.arange(out_w) * T) // out_w).astype(jnp.int32)
        img1 = spec[:, :, cols]
    img = jnp.broadcast_to(img1[:, None, :, :], (B, 3, out_h, out_w))  # channel triplication
    frames_num = out_w
    return img, frames_num


# ------------------------------ plain-JAX reference ------------------------------
def reference_forward(wave, w_comb_bf16):
    """Straightforward (unfused) JAX version of the eval-mode forward, for validation."""
    B, L = wave.shape
    pad = WINDOW_SIZE // 2
    x = jnp.pad(wave, ((0, 0), (pad, pad)), mode='reflect')
    Lp = x.shape[1]
    T = (Lp - WINDOW_SIZE) // HOP_SIZE + 1
    idx = np.arange(T)[:, None] * HOP_SIZE + np.arange(WINDOW_SIZE)[None, :]
    frames = x[:, idx]                                                  # (B, T, n_fft)
    comb = jnp.einsum('btn,nk->btk', frames.astype(jnp.bfloat16), w_comb_bf16,
                      preferred_element_type=jnp.float32)               # (B, T, 128)
    power = comb * comb
    p = power[..., :FREQ_BINS] + power[..., FREQ_BINS:2 * FREQ_BINS]    # (B, T, F)
    mel = jnp.asarray(_mel_filterbank(SAMPLE_RATE, WINDOW_SIZE, MEL_BINS, FMIN, FMAX))
    melspec = jnp.einsum('btf,fm->btm', p, mel)                         # (B, T, mel)
    logmel = 10.0 * jnp.log10(jnp.maximum(melspec, AMIN)) - 10.0 * np.log10(max(AMIN, REF))
    s = 1.0 / np.sqrt(1.0 + BN_EPS)                                     # bn0 eval, identity affine
    spec = jnp.transpose(logmel * s, (0, 2, 1))                         # (B, mel, T)
    out_h = IMG_SIZE
    out_w = (T * IMG_SIZE) // MEL_BINS
    rows = (np.arange(out_h) * MEL_BINS) // out_h
    cols = (np.arange(out_w) * T) // out_w
    img1 = spec[:, rows][:, :, cols]                                    # nearest resize
    img = jnp.broadcast_to(img1[:, None], (B, 3, out_h, out_w))
    return img, out_w


if __name__ == "__main__":
    w_comb, mel_img, bn_scale, bn_bias = build_params()

    key = jax.random.PRNGKey(0)
    wave = jax.random.normal(key, (2, 512), dtype=jnp.float32)          # (batch, samples)

    run = jax.jit(lambda w: wave_to_spec(w, w_comb, mel_img, bn_scale, bn_bias)[0])
    img = run(wave)
    jax.block_until_ready(img)

    T = 512 // HOP_SIZE + 1                    # 33 frames (center=True, 2*pad == n_fft)
    expected_w = (T * IMG_SIZE) // MEL_BINS    # 66
    assert img.shape == (2, 3, IMG_SIZE, expected_w) and img.dtype == jnp.float32
    assert bool(jnp.all(jnp.isfinite(img)))

    ref_img, ref_w = reference_forward(wave, w_comb)
    assert ref_w == expected_w and ref_img.shape == img.shape
    max_err = float(jnp.max(jnp.abs(img - ref_img)))
    assert np.isfinite(max_err) and max_err < 1e-1, f"max_err={max_err}"
    # TODO(synk): SpecAugmentation is training-only (self.training); eval-mode forward is implemented.
    print("KERNEL_OK")
</pallas_src>

<mosaic_0001>
module attributes {stable_mosaic.version = 11 : i64} {
  func.func @kernel(%arg0: i32, %arg1: i32, %arg2: memref<48x16xf32, #tpu.memory_space<vmem>>, %arg3: memref<64x128xbf16, #tpu.memory_space<vmem>>, %arg4: memref<128x128xf32, #tpu.memory_space<vmem>>, %arg5: memref<1x128xf32, #tpu.memory_space<vmem>>, %arg6: memref<1x128xf32, #tpu.memory_space<vmem>>, %arg7: memref<40x128xf32, #tpu.memory_space<vmem>>) attributes {dimension_semantics = [#tpu.dimension_semantics<parallel>, #tpu.dimension_semantics<parallel>], iteration_bounds = array<i64: 2, 1>, scalar_prefetch = 0 : i64, scratch_operands = 0 : i64, tpu.core_type = #tpu.core_type<tc>, window_params = [{transform_indices = @transform_0, window_bounds = array<i64: 48, 16>}, {pipeline_mode = #tpu.pipeline_mode<synchronous>, transform_indices = @transform_1, window_bounds = array<i64: 64, 128>}, {pipeline_mode = #tpu.pipeline_mode<synchronous>, transform_indices = @transform_2, window_bounds = array<i64: 128, 128>}, {pipeline_mode = #tpu.pipeline_mode<synchronous>, transform_indices = @transform_3, window_bounds = array<i64: 1, 128>}, {pipeline_mode = #tpu.pipeline_mode<synchronous>, transform_indices = @transform_4, window_bounds = array<i64: 1, 128>}, {transform_indices = @transform_5, window_bounds = array<i64: 40, 128>}]} {
    %c40_i32 = arith.constant 40 : i32
    %0 = arith.muli %arg1, %c40_i32 : i32
    %1 = tpu.assume_multiple %0, 8 : i32
    %2 = arith.index_cast %1 : i32 to index
    %c0 = arith.constant 0 : index
    %3 = vector.load %arg2[%2, %c0] : memref<48x16xf32, #tpu.memory_space<vmem>>, vector<48x16xf32>
    %4 = vector.extract_strided_slice %3 {offsets = [0, 0], sizes = [40, 16], strides = [1, 1]} : vector<48x16xf32> to vector<40x16xf32>
    %5 = vector.extract_strided_slice %3 {offsets = [1, 0], sizes = [40, 16], strides = [1, 1]} : vector<48x16xf32> to vector<40x16xf32>
    %6 = vector.extract_strided_slice %3 {offsets = [2, 0], sizes = [40, 16], strides = [1, 1]} : vector<48x16xf32> to vector<40x16xf32>
    %7 = vector.extract_strided_slice %3 {offsets = [3, 0], sizes = [40, 16], strides = [1, 1]} : vector<48x16xf32> to vector<40x16xf32>
    %8 = tpu.concatenate %4, %5, %6, %7 in 1 : vector<40x16xf32>, vector<40x16xf32>, vector<40x16xf32>, vector<40x16xf32> -> vector<40x64xf32>
    %9 = arith.truncf %8 : vector<40x64xf32> to vector<40x64xbf16>
    %c0_0 = arith.constant 0 : index
    %c0_1 = arith.constant 0 : index
    %10 = vector.load %arg3[%c0_0, %c0_1] : memref<64x128xbf16, #tpu.memory_space<vmem>>, vector<64x128xbf16>
    %cst = arith.constant dense<0.000000e+00> : vector<40x128xf32>
    %11 = tpu.matmul %9, %10, %cst {dimension_numbers = #tpu.dot_dimension_numbers<[1], [0], [0], [1], [0, 0, 1, 1], [], []>} : vector<40x64xbf16>, vector<64x128xbf16>, vector<40x128xf32> -> vector<40x128xf32>
    %12 = arith.mulf %11, %11 : vector<40x128xf32>
    %c0_2 = arith.constant 0 : index
    %c0_3 = arith.constant 0 : index
    %13 = vector.load %arg4[%c0_2, %c0_3] : memref<128x128xf32, #tpu.memory_space<vmem>>, vector<128x128xf32>
    %cst_4 = arith.constant dense<0.000000e+00> : vector<40x128xf32>
    %14 = tpu.matmul %12, %13, %cst_4 {dimension_numbers = #tpu.dot_dimension_numbers<[1], [0], [0], [1], [0, 0, 1, 1], [], []>} : vector<40x128xf32>, vector<128x128xf32>, vector<40x128xf32> -> vector<40x128xf32>
    %cst_5 = arith.constant 1.000000e-10 : f32
    %15 = vector.broadcast %cst_5 : f32 to vector<40x128xf32>
    %16 = arith.maximumf %14, %15 : vector<40x128xf32>
    %17 = math.log %16 : vector<40x128xf32>
    %cst_6 = arith.constant 0.434294492 : f32
    %18 = vector.broadcast %cst_6 : f32 to vector<40x128xf32>
    %19 = arith.mulf %17, %18 : vector<40x128xf32>
    %cst_7 = arith.constant 1.000000e+01 : f32
    %20 = vector.broadcast %cst_7 : f32 to vector<40x128xf32>
    %21 = arith.mulf %20, %19 : vector<40x128xf32>
    %c0_8 = arith.constant 0 : index
    %c0_9 = arith.constant 0 : index
    %22 = vector.load %arg5[%c0_8, %c0_9] : memref<1x128xf32, #tpu.memory_space<vmem>>, vector<1x128xf32>
    %23 = vector.broadcast %22 : vector<1x128xf32> to vector<40x128xf32>
    %24 = arith.mulf %21, %23 : vector<40x128xf32>
    %c0_10 = arith.constant 0 : index
    %c0_11 = arith.constant 0 : index
    %25 = vector.load %arg6[%c0_10, %c0_11] : memref<1x128xf32, #tpu.memory_space<vmem>>, vector<1x128xf32>
    %26 = vector.broadcast %25 : vector<1x128xf32> to vector<40x128xf32>
    %27 = arith.addf %24, %26 : vector<40x128xf32>
    %c0_12 = arith.constant 0 : index
    %c0_13 = arith.constant 0 : index
    %28 = vector.load %arg7[%c0_12, %c0_13] : memref<40x128xf32, #tpu.memory_space<vmem>>, vector<40x128xf32>
    tpu.vector_store %arg7[%c0_12, %c0_13], %27 {strides = array<i32>} : memref<40x128xf32, #tpu.memory_space<vmem>>, vector<40x128xf32>,
    return
  }
  func.func @transform_0(%arg0: i32, %arg1: i32) -> (i32, i32) {
    %c0_i32 = arith.constant 0 : i32
    %c0_i32_0 = arith.constant 0 : i32
    return %arg0, %c0_i32 : i32, i32
  }
  func.func @transform_1(%arg0: i32, %arg1: i32) -> (i32, i32) {
    %c0_i32 = arith.constant 0 : i32
    %c0_i32_0 = arith.constant 0 : i32
    %c0_i32_1 = arith.constant 0 : i32
    return %c0_i32, %c0_i32_0 : i32, i32
  }
  func.func @transform_2(%arg0: i32, %arg1: i32) -> (i32, i32) {
    %c0_i32 = arith.constant 0 : i32
    %c0_i32_0 = arith.constant 0 : i32
    %c0_i32_1 = arith.constant 0 : i32
    return %c0_i32, %c0_i32_0 : i32, i32
  }
  func.func @transform_3(%arg0: i32, %arg1: i32) -> (i32, i32) {
    %c0_i32 = arith.constant 0 : i32
    %c0_i32_0 = arith.constant 0 : i32
    %c0_i32_1 = arith.constant 0 : i32
    return %c0_i32, %c0_i32_0 : i32, i32
  }
  func.func @transform_4(%arg0: i32, %arg1: i32) -> (i32, i32) {
    %c0_i32 = arith.constant 0 : i32
    %c0_i32_0 = arith.constant 0 : i32
    %c0_i32_1 = arith.constant 0 : i32
    return %c0_i32, %c0_i32_0 : i32, i32
  }
  func.func @transform_5(%arg0: i32, %arg1: i32) -> (i32, i32) {
    %c1_i32 = arith.constant 1 : i32
    %0 = arith.muli %arg0, %c1_i32 : i32
    %1 = arith.addi %0, %arg1 : i32
    %c0_i32 = arith.constant 0 : i32
    %c0_i32_0 = arith.constant 0 : i32
    return %1, %c0_i32 : i32, i32
  }
}

</mosaic_0001>

<llo_original>
// kernel: _lambda_.1
$region0: #{_lambda_.1}
  #allocation0 [shape = 'u32[]', space=smem, size = 0x4, offset = 0x4, fixed_abs, tag = 'smem constant byte address 0x4 - core index']
  #allocation1 [shape = 'u32[72,128]{1,0:T(1,128)}', space=vmem, size = 0x9000, scoped, tag = 'internal scratch']
  %s0 = inlined_call_operand.vmem [shape: f32[96,16], index: 0, kind: input, shape index: {}]
  %s1 = inlined_call_operand.hbm [shape: bf16[64,128], index: 1, kind: input, shape index: {}]
  %s2 = inlined_call_operand.vmem [shape: f32[128,128], index: 2, kind: input, shape index: {}]
  %s3 = inlined_call_operand.vmem [shape: f32[1,128], index: 3, kind: input, shape index: {}]
  %s4 = inlined_call_operand.vmem [shape: f32[1,128], index: 4, kind: input, shape index: {}]
  %s5 = inlined_call_operand.vmem [shape: f32[80,128], index: 5, kind: output, shape index: {}]
  %s6 = sld [smem:[#allocation0]]
  $region57: #{_lambda_.1} parent=0
    _
  %s8 = ssub.s32 1, %s6
  %s9 = scalar_select 0, %s8, %s6
  $region1: #{_lambda_.1} parent=0
    #allocation2 [shape = 'u8[16384]{0}', space=vmem, size = 0x4000, scoped, tag = 'input window, operand 1, single buffered']
    #allocation3 [shape = 's32[2]{0}', space=sflag, size = 0x8, scoped, tag = 'scoped memory for _lambda_.1']
    %10 = vsyncpa [#allocation3], 0
    loop: start=0, step=1, limit=4
    $region2: #{_lambda_.1} parent=1 // loop_pre_header
      _
    $region3: #{_lambda_.1} parent=1 // loop_header
      %s12 = sphi 0, %s16
      %p13 = scmp.ge.s32.totalorder %s12, 4
      %s19 = sphi 0, %s31
      %s20 = sphi 0, %s27
      %s21 = sphi 0, %s19
      %s22 = sphi 0, %s20
      %s23 = sphi 0, %s21
      %s24 = sphi 0, %s22
      %s34 = sphi 0, %s36
      %s37 = sphi 0, %s34
      %s38 = sphi 0, %s37
      %s54 = sphi 0, %s38
      %s58 = sphi 0, %s58
      %s60 = sphi 0, %s58
      %s61 = sphi 0, %s60
      %s75 = sphi 0, %s61
      %s79 = sphi 0, %s79
      %s81 = sphi 0, %s79
      %s82 = sphi 0, %s81
      %s96 = sphi 0, %s82
      %s100 = sphi 0, %s100
      %s102 = sphi 0, %s100
      %s103 = sphi 0, %s102
      %s117 = sphi 0, %s103
      %s121 = sphi 0, %s121
      %s123 = sphi 0, %s121
      %s124 = sphi 0, %s123
      %s138 = sphi 0, %s124
      %s146 = sphi 0, %s148
      %s149 = sphi 0, %s146
      %s150 = sphi 0, %s149
      %s166 = sphi 0, %s150
    $region4: #{_lambda_.1} parent=1 // loop_header_branch
      %15 = sbr.rel (%p13) target = $region8
    $region5: #{_lambda_.1} parent=1 // loop_body
      %s17 = ssub.s32 %s12, 1
      %s18 = ssub.s32 %s12, 2
      %s25 = sadd.s32 1, %s20
      %p26 = scmp.ge.s32.totalorder %s25, 1
      %s27 = scalar_select %p26, 0, %s25
      %s28 = sadd.s32 1, %s19
      %s29 = scalar_select %p26, %s28, %s19
      %p30 = scmp.ge.s32.totalorder %s29, 2
      %s31 = scalar_select %p30, 0, %s29
      %s32 = ssub.s32 %s19, %s31
      %p33 = scmp.eq.s32.totalorder %s32, 0
      %s35 = sadd.s32 %s34, 1
      %s36 = scalar_select %p33, %s34, %s35
      %p39 = pneg %p33
      %p40 = scmp.eq.s32.totalorder %s12, 1
      %p41 = por %p39, %p40
      %p42 = scmp.ne.s32.totalorder %s34, %s37
      %p43 = scmp.eq.s32.totalorder %s12, 0
      %p44 = por %p42, %p43
      %p45 = scmp.ne.s32.totalorder %s34, %s37
      %p46 = scmp.eq.s32.totalorder %s17, 1
      %p47 = por %p45, %p46
      %p48 = scmp.ne.s32.totalorder %s37, %s38
      %p49 = scmp.eq.s32.totalorder %s17, 0
      %p50 = por %p48, %p49
      %p51 = scmp.ne.s32.totalorder %s37, %s38
      %p52 = scmp.eq.s32.totalorder %s18, 1
      %p53 = por %p51, %p52
      %p55 = scmp.ne.s32.totalorder %s38, %s54
      %p56 = scmp.eq.s32.totalorder %s18, 0
      %p57 = por %p55, %p56
      %s59 = sadd.s32 %s58, 1
      %p62 = scmp.eq.s32.totalorder %s12, 1
      %p63 = scmp.ne.s32.totalorder %s58, %s60
      %p64 = scmp.eq.s32.totalorder %s12, 0
      %p65 = por %p63, %p64
      %p66 = scmp.ne.s32.totalorder %s58, %s60
      %p67 = scmp.eq.s32.totalorder %s17, 1
      %p68 = por %p66, %p67
      %p69 = scmp.ne.s32.totalorder %s60, %s61
      %p70 = scmp.eq.s32.totalorder %s17, 0
      %p71 = por %p69, %p70
      %p72 = scmp.ne.s32.totalorder %s60, %s61
      %p73 = scmp.eq.s32.totalorder %s18, 1
      %p74 = por %p72, %p73
      %p76 = scmp.ne.s32.totalorder %s61, %s75
      %p77 = scmp.eq.s32.totalorder %s18, 0
      %p78 = por %p76, %p77
      %s80 = sadd.s32 %s79, 1
      %p83 = scmp.eq.s32.totalorder %s12, 1
      %p84 = scmp.ne.s32.totalorder %s79, %s81
      %p85 = scmp.eq.s32.totalorder %s12, 0
      %p86 = por %p84, %p85
      %p87 = scmp.ne.s32.totalorder %s79, %s81
      %p88 = scmp.eq.s32.totalorder %s17, 1
      %p89 = por %p87, %p88
      %p90 = scmp.ne.s32.totalorder %s81, %s82
      %p91 = scmp.eq.s32.totalorder %s17, 0
      %p92 = por %p90, %p91
      %p93 = scmp.ne.s32.totalorder %s81, %s82
      %p94 = scmp.eq.s32.totalorder %s18, 1
      %p95 = por %p93, %p94
      %p97 = scmp.ne.s32.totalorder %s82, %s96
      %p98 = scmp.eq.s32.totalorder %s18, 0
      %p99 = por %p97, %p98
      %s101 = sadd.s32 %s100, 1
      %p104 = scmp.eq.s32.totalorder %s12, 1
      %p105 = scmp.ne.s32.totalorder %s100, %s102
      %p106 = scmp.eq.s32.totalorder %s12, 0
      %p107 = por %p105, %p106
      %p108 = scmp.ne.s32.totalorder %s100, %s102
      %p109 = scmp.eq.s32.totalorder %s17, 1
      %p110 = por %p108, %p109
      %p111 = scmp.ne.s32.totalorder %s102, %s103
      %p112 = scmp.eq.s32.totalorder %s17, 0
      %p113 = por %p111, %p112
      %p114 = scmp.ne.s32.totalorder %s102, %s103
      %p115 = scmp.eq.s32.totalorder %s18, 1
      %p116 = por %p114, %p115
      %p118 = scmp.ne.s32.totalorder %s103, %s117
      %p119 = scmp.eq.s32.totalorder %s18, 0
      %p120 = por %p118, %p119
      %s122 = sadd.s32 %s121, 1
      %p125 = scmp.eq.s32.totalorder %s12, 1
      %p126 = scmp.ne.s32.totalorder %s121, %s123
      %p127 = scmp.eq.s32.totalorder %s12, 0
      %p128 = por %p126, %p127
      %p129 = scmp.ne.s32.totalorder %s121, %s123
      %p130 = scmp.eq.s32.totalorder %s17, 1
      %p131 = por %p129, %p130
      %p132 = scmp.ne.s32.totalorder %s123, %s124
      %p133 = scmp.eq.s32.totalorder %s17, 0
      %p134 = por %p132, %p133
      %p135 = scmp.ne.s32.totalorder %s123, %s124
      %p136 = scmp.eq.s32.totalorder %s18, 1
      %p137 = por %p135, %p136
      %p139 = scmp.ne.s32.totalorder %s124, %s138
      %p140 = scmp.eq.s32.totalorder %s18, 0
      %p141 = por %p139, %p140
      %s142 = sadd.s32 %s19, %s20
      %s143 = sadd.s32 %s31, %s27
      %s144 = ssub.s32 %s142, %s143
      %p145 = scmp.eq.s32.totalorder %s144, 0
      %s147 = sadd.s32 %s146, 1
      %s148 = scalar_select %p145, %s146, %s147
      %p151 = pneg %p145
      %p152 = scmp.eq.s32.totalorder %s12, 1
      %p153 = por %p151, %p152
      %p154 = scmp.ne.s32.totalorder %s146, %s149
      %p155 = scmp.eq.s32.totalorder %s12, 0
      %p156 = por %p154, %p155
      %p157 = scmp.ne.s32.totalorder %s146, %s149
      %p158 = scmp.eq.s32.totalorder %s17, 1
      %p159 = por %p157, %p158
      %p160 = scmp.ne.s32.totalorder %s149, %s150
      %p161 = scmp.eq.s32.totalorder %s17, 0
      %p162 = por %p160, %p161
      %p163 = scmp.ne.s32.totalorder %s149, %s150
      %p164 = scmp.eq.s32.totalorder %s18, 1
      %p165 = por %p163, %p164
      %p167 = scmp.ne.s32.totalorder %s150, %s166
      %p168 = scmp.eq.s32.totalorder %s18, 0
      %p169 = por %p167, %p168
      %p170 = scmp.le.s32.totalorder 1, %s12
      %p171 = scmp.lt.s32.totalorder %s12, 3
      %p172 = pnand %p170, %p171
      %p173 = pneg %p172
      // Predicated region
      $region9: #{_lambda_.1} parent=5 // pred_check
        _
      $region10: #{_lambda_.1} parent=5 // pred_check_branch
        %175 = sbr.rel (%p172) target = $region12
      $region11: #{_lambda_.1} parent=5 // pred_region
        %s176 = ssub.s32 %s12, 1
        // Predicated region
        $region13: #{_lambda_.1} parent=11 // pred_check
          %p177 = pneg %p71
        $region14: #{_lambda_.1} parent=11 // pred_check_branch
          %179 = sbr.rel (%p177) target = $region16
        $region15: #{_lambda_.1} parent=11 // pred_region
          %181 = vsyncadd [#allocation3], 0
          %s182 = sshll.u32 %s1, 4
          %s183 = int_to_ptr.hbm [resolvable:$true] %s182
          %s184 = sshll.u32 [#allocation2], 4
          %s185 = int_to_ptr.vmem [resolvable:$true] %s184
          %190 = dma.hbm_to_vmem [thread:$0]  %s183, 512, %s185, [#allocation3], 64, 64, 4
        $region16: #{_lambda_.1} parent=11 // pred_fallthru
          _
        // Predicated region
        $region17: #{_lambda_.1} parent=11 // pred_check
          %p191 = pneg %p92
        $region18: #{_lambda_.1} parent=11 // pred_check_branch
          %193 = sbr.rel (%p191) target = $region20
        $region19: #{_lambda_.1} parent=11 // pred_region
          _
        $region20: #{_lambda_.1} parent=11 // pred_fallthru
          _
        // Predicated region
        $region21: #{_lambda_.1} parent=11 // pred_check
          %p194 = pneg %p113
        $region22: #{_lambda_.1} parent=11 // pred_check_branch
          %196 = sbr.rel (%p194) target = $region24
        $region23: #{_lambda_.1} parent=11 // pred_region
          _
        $region24: #{_lambda_.1} parent=11 // pred_fallthru
          _
        // Predicated region
        $region25: #{_lambda_.1} parent=11 // pred_check
          %p197 = pneg %p134
        $region26: #{_lambda_.1} parent=11 // pred_check_branch
          %199 = sbr.rel (%p197) target = $region28
        $region27: #{_lambda_.1} parent=11 // pred_region
          _
        $region28: #{_lambda_.1} parent=11 // pred_fallthru
          _
      $region12: #{_lambda_.1} parent=5 // pred_fallthru
        _
      %p200 = scmp.lt.s32.totalorder %s12, 2
      // Predicated region
      $region29: #{_lambda_.1} parent=5 // pred_check
        %p201 = pneg %p200
      $region30: #{_lambda_.1} parent=5 // pred_check_branch
        %203 = sbr.rel (%p201) target = $region32
      $region31: #{_lambda_.1} parent=5 // pred_region
        // Predicated region
        $region33: #{_lambda_.1} parent=31 // pred_check
          %p204 = pneg %p44
        $region34: #{_lambda_.1} parent=31 // pred_check_branch
          %206 = sbr.rel (%p204) target = $region36
        $region35: #{_lambda_.1} parent=31 // pred_region
          %s207 = smul.u32 6, %s19
          %p208 = scmp.lt.s32.totalorder %s207, 11
          %s209 = scalar_select %p208, %s207, 11
          %s210 = smul.addr %s209, 8
          %s211 = scalar_lea.vmem %s0, %s210
          %s212 = smul.u32 6, %s19
        $region36: #{_lambda_.1} parent=31 // pred_fallthru
          _
      $region32: #{_lambda_.1} parent=5 // pred_fallthru
        _
      %p213 = scmp.le.s32.totalorder 1, %s12
      %p214 = scmp.lt.s32.totalorder %s12, 3
      %p215 = pnand %p213, %p214
      %p216 = pneg %p215
      // Predicated region
      $region37: #{_lambda_.1} parent=5 // pred_check
        _
      $region38: #{_lambda_.1} parent=5 // pred_check_branch
        %218 = sbr.rel (%p215) target = $region40
      $region39: #{_lambda_.1} parent=5 // pred_region
        %s219 = ssub.s32 %s12, 1
        // Predicated region
        $region41: #{_lambda_.1} parent=39 // pred_check
          %p220 = pneg %p71
        $region42: #{_lambda_.1} parent=39 // pred_check_branch
          %222 = sbr.rel (%p220) target = $region44
        $region43: #{_lambda_.1} parent=39 // pred_region
          %224 = dma.done [#allocation3], 512
        $region44: #{_lambda_.1} parent=39 // pred_fallthru
          _
        %s225 = smul.u32 6, %s21
        %p226 = scmp.lt.s32.totalorder %s225, 11
        %s227 = scalar_select %p226, %s225, 11
        %s228 = smul.addr %s227, 8
        %s229 = scalar_lea.vmem %s0, %s228
        %p230 = pneg %p50
        %p231 = pneg %p47
        %p232 = pneg %p71
        %p233 = pneg %p68
        %p234 = pneg %p92
        %p235 = pneg %p89
        %p236 = pneg %p113
        %p237 = pneg %p110
        %p238 = pneg %p134
        %p239 = pneg %p131
        %p240 = pneg %p162
        %p241 = pneg %p159
        %s242 = sadd.s32 %s21, %s22
        %s243 = smul.u32 5, %s242
        %p244 = scmp.lt.s32.totalorder %s243, 9
        %s245 = scalar_select %p244, %s243, 9
        %s246 = smul.addr %s245, 8
        %s247 = scalar_lea.vmem %s5, %s246
        %s248 = smul.u32 6, %s21
        %p249 = scmp.lt.s32.totalorder %s248, 11
        %s250 = scalar_select %p249, %s248, 11
        %s251 = smul.addr %s250, 8
        %s252 = scalar_lea.vmem %s0, %s251
        %s253 = smul.u32 6, %s21
        %s254 = sadd.s32 %s21, %s22
        %s255 = smul.u32 5, %s254
        %p256 = scmp.lt.s32.totalorder %s255, 9
        %s257 = scalar_select %p256, %s255, 9
        %s258 = smul.addr %s257, 8
        %s259 = scalar_lea.vmem %s5, %s258
        %s260 = sadd.s32 %s21, %s22
        %s261 = smul.u32 5, %s260
        %s263 = smul.u32 %s22, 40
        %s264 = scalar_lea.vmem %s252, %s263
        %v265 = vld [vmem:[%s264] sm:$0xff]
        %v266 = vld [vmem:[%s264 + $0x8] sm:$0xff]
        %v267 = vld [vmem:[%s264 + $0x10] sm:$0xff]
        %v268 = vld [vmem:[%s264 + $0x18] sm:$0xff]
        %v269 = vld [vmem:[%s264 + $0x20] sm:$0xff]
        %v270 = vld [vmem:[%s264 + $0x28] sm:$0xff]
        %vm277 = vcmask 1046528
        %v278 = vrot.slane %v265, 1
        %v279 = vrot.slane %v266, 1
        %v280 = vsel %vm277, %v278, %v279
        %v281 = vrot.slane %v267, 1
        %v282 = vsel %vm277, %v279, %v281
        %v283 = vrot.slane %v268, 1
        %v284 = vsel %vm277, %v281, %v283
        %v285 = vrot.slane %v269, 1
        %v286 = vsel %vm277, %v283, %v285
        %v287 = vrot.slane %v270, 1
        %v288 = vsel %vm277, %v285, %v287
        %289 = vrot.lane.b32.xlu0 %v280, 16
        %v290 = vpop.permute.xlu0 %289
        %291 = vrot.lane.b32.xlu0 %v282, 16
        %v292 = vpop.permute.xlu0 %291
        %293 = vrot.lane.b32.xlu0 %v284, 16
        %v294 = vpop.permute.xlu0 %293
        %295 = vrot.lane.b32.xlu0 %v286, 16
        %v296 = vpop.permute.xlu0 %295
        %297 = vrot.lane.b32.xlu0 %v288, 16
        %v298 = vpop.permute.xlu0 %297
        %vm304 = vcmask 1045504
        %v305 = vrot.slane %v265, 2
        %v306 = vrot.slane %v266, 2
        %v307 = vsel %vm304, %v305, %v306
        %v308 = vrot.slane %v267, 2
        %v309 = vsel %vm304, %v306, %v308
        %v310 = vrot.slane %v268, 2
        %v311 = vsel %vm304, %v308, %v310
        %v312 = vrot.slane %v269, 2
        %v313 = vsel %vm304, %v310, %v312
        %v314 = vrot.slane %v270, 2
        %v315 = vsel %vm304, %v312, %v314
        %316 = vrot.lane.b32.xlu0 %v307, 32
        %v317 = vpop.permute.xlu0 %316
        %318 = vrot.lane.b32.xlu0 %v309, 32
        %v319 = vpop.permute.xlu0 %318
        %320 = vrot.lane.b32.xlu0 %v311, 32
        %v321 = vpop.permute.xlu0 %320
        %322 = vrot.lane.b32.xlu0 %v313, 32
        %v323 = vpop.permute.xlu0 %322
        %324 = vrot.lane.b32.xlu0 %v315, 32
        %v325 = vpop.permute.xlu0 %324
        %vm331 = vcmask 1044480
        %v332 = vrot.slane %v265, 3
        %v333 = vrot.slane %v266, 3
        %v334 = vsel %vm331, %v332, %v333
        %v335 = vrot.slane %v267, 3
        %v336 = vsel %vm331, %v333, %v335
        %v337 = vrot.slane %v268, 3
        %v338 = vsel %vm331, %v335, %v337
        %v339 = vrot.slane %v269, 3
        %v340 = vsel %vm331, %v337, %v339
        %v341 = vrot.slane %v270, 3
        %v342 = vsel %vm331, %v339, %v341
        %343 = vrot.lane.b32.xlu0 %v334, 48
        %v344 = vpop.permute.xlu0 %343
        %345 = vrot.lane.b32.xlu0 %v336, 48
        %v346 = vpop.permute.xlu0 %345
        %347 = vrot.lane.b32.xlu0 %v338, 48
        %v348 = vpop.permute.xlu0 %347
        %349 = vrot.lane.b32.xlu0 %v340, 48
        %v350 = vpop.permute.xlu0 %349
        %351 = vrot.lane.b32.xlu0 %v342, 48
        %v352 = vpop.permute.xlu0 %351
        %vm358 = vcmask 130048
        %v359 = vsel %vm358, %v265, %v290
        %v360 = vsel %vm358, %v266, %v292
        %v361 = vsel %vm358, %v267, %v294
        %v362 = vsel %vm358, %v268, %v296
        %v363 = vsel %vm358, %v269, %v298
        %vm364 = vcmask 261120
        %v365 = vsel %vm364, %v359, %v317
        %v366 = vsel %vm364, %v360, %v319
        %v367 = vsel %vm364, %v361, %v321
        %v368 = vsel %vm364, %v362, %v323
        %v369 = vsel %vm364, %v363, %v325
        %vm370 = vcmask 392192
        %v371 = vsel %vm370, %v365, %v344
        %v372 = vsel %vm370, %v366, %v346
        %v373 = vsel %vm370, %v367, %v348
        %v374 = vsel %vm370, %v368, %v350
        %v375 = vsel %vm370, %v369, %v352
        %v376 = vpack.c.bf16 %v372, %v371
        %v377 = vpack.c.bf16 %v374, %v373
        %v378 = vpack.c.bf16 %v375, %v375
        %v379 = vld [vmem:[#allocation2] sm:$0xf]
        %v380 = vld [vmem:[#allocation2 + $0x4] sm:$0xf]
        %v381 = vld [vmem:[#allocation2 + $0x8] sm:$0xf]
        %v382 = vld [vmem:[#allocation2 + $0xc] sm:$0xf]
        %v383 = vld [vmem:[#allocation2 + $0x10] sm:$0xf]
        %v384 = vld [vmem:[#allocation2 + $0x14] sm:$0xf]
        %v385 = vld [vmem:[#allocation2 + $0x18] sm:$0xf]
        %v386 = vld [vmem:[#allocation2 + $0x1c] sm:$0xf]
        %v395 = vunpack.c.l.b16 %v379
        %v396 = vunpack.c.l.b16 %v380
        %v397 = vunpack.c.l.b16 %v381
        %v398 = vunpack.c.l.b16 %v382
        %v399 = vunpack.c.l.b16 %v383
        %v400 = vunpack.c.l.b16 %v384
        %v401 = vunpack.c.l.b16 %v385
        %v402 = vunpack.c.l.b16 %v386
        %v403 = vpack.c.b16 %v396, %v395
        %v404 = vpack.c.b16 %v398, %v397
        %v405 = vpack.c.b16 %v400, %v399
        %v406 = vpack.c.b16 %v402, %v401
        %vm411 = vcmask 523264
        %v413 = vsel %vm411, %v376, 0
        %v416 = vsel %vm411, %v377, 0
        %v419 = vsel %vm411, %v378, 0
        %421 = vmatpush.bf16.msra.mxu0 0
        %422 = vmatpush.bf16.msra.mxu0 0
        %423 = vmatpush.bf16.msra.mxu0 0
        %424 = vmatpush.bf16.msra.mxu0 0
        %425 = vmatpush.bf16.msra.mxu0 %v406
        %426 = vmatpush.bf16.msra.mxu0 %v405
        %427 = vmatpush.bf16.msra.mxu0 %v404
        %428 = vmatpush.bf16.msra.mxu0 %v403
        %429 = vmatmul.bf16.gmra.mxu0 %v413
        %v430 = vpop.f32.mrf.mxu0
        %v431 = vadd.f32 0.0, %v430
        %v432 = vpop.f32.mrf.mxu0
        %v433 = vadd.f32 0.0, %v432
        %434 = vmatmul.bf16.gmra.mxu0 %v416
        %v435 = vpop.f32.mrf.mxu0
        %v436 = vadd.f32 0.0, %v435
        %v437 = vpop.f32.mrf.mxu0
        %v438 = vadd.f32 0.0, %v437
        %439 = vmatmul.bf16.gmra.mxu0 %v419
        %v440 = vpop.f32.mrf.mxu0
        %v441 = vadd.f32 0.0, %v440
        %v442 = vpop.f32.mrf.mxu0
        %443 = vdwg.mxu0
        %v444 = vmul.f32 %v431, %v431
        %v445 = vmul.f32 %v433, %v433
        %v446 = vmul.f32 %v436, %v436
        %v447 = vmul.f32 %v438, %v438
        %v448 = vmul.f32 %v441, %v441
        %v449 = vld [vmem:[%s2] sm:$0xff]
        %v450 = vld [vmem:[%s2 + $0x8] sm:$0xff]
        %v451 = vld [vmem:[%s2 + $0x10] sm:$0xff]
        %v452 = vld [vmem:[%s2 + $0x18] sm:$0xff]
        %v453 = vld [vmem:[%s2 + $0x20] sm:$0xff]
        %v454 = vld [vmem:[%s2 + $0x28] sm:$0xff]
        %v455 = vld [vmem:[%s2 + $0x30] sm:$0xff]
        %v456 = vld [vmem:[%s2 + $0x38] sm:$0xff]
        %v457 = vld [vmem:[%s2 + $0x40] sm:$0xff]
        %v458 = vld [vmem:[%s2 + $0x48] sm:$0xff]
        %v459 = vld [vmem:[%s2 + $0x50] sm:$0xff]
        %v460 = vld [vmem:[%s2 + $0x58] sm:$0xff]
        %v461 = vld [vmem:[%s2 + $0x60] sm:$0xff]
        %v462 = vld [vmem:[%s2 + $0x68] sm:$0xff]
        %v463 = vld [vmem:[%s2 + $0x70] sm:$0xff]
        %v464 = vld [vmem:[%s2 + $0x78] sm:$0xff]
        %465 = vmatpush.msra.mxu0 %v464
        %466 = vmatpush.msra.mxu0 %v463
        %467 = vmatpush.msra.mxu0 %v462
        %468 = vmatpush.msra.mxu0 %v461
        %469 = vmatpush.msra.mxu0 %v460
        %470 = vmatpush.msra.mxu0 %v459
        %471 = vmatpush.msra.mxu0 %v458
        %472 = vmatpush.msra.mxu0 %v457
        %473 = vmatpush.msra.mxu0 %v456
        %474 = vmatpush.msra.mxu0 %v455
        %475 = vmatpush.msra.mxu0 %v454
        %476 = vmatpush.msra.mxu0 %v453
        %477 = vmatpush.msra.mxu0 %v452
        %478 = vmatpush.msra.mxu0 %v451
        %479 = vmatpush.msra.mxu0 %v450
        %480 = vmatpush.msra.mxu0 %v449
        %481 = vmatmul.f32.gmra.mxu0 %v444
        %v482 = vpop.f32.mrf.mxu0
        %v483 = vadd.f32 0.0, %v482
        %484 = vmatmul.f32.gmra.mxu0 %v445
        %v485 = vpop.f32.mrf.mxu0
        %v486 = vadd.f32 0.0, %v485
        %487 = vmatmul.f32.gmra.mxu0 %v446
        %v488 = vpop.f32.mrf.mxu0
        %v489 = vadd.f32 0.0, %v488
        %490 = vmatmul.f32.gmra.mxu0 %v447
        %v491 = vpop.f32.mrf.mxu0
        %v492 = vadd.f32 0.0, %v491
        %493 = vmatmul.f32.gmra.mxu0 %v448
        %v494 = vpop.f32.mrf.mxu0
        %v495 = vadd.f32 0.0, %v494
        %496 = vdwg.mxu0
        %v497 = vmax.f32 %v483, 1e-10
        %v498 = vmax.f32 %v486, 1e-10
        %v499 = vmax.f32 %v489, 1e-10
        %v500 = vmax.f32 %v492, 1e-10
        %v501 = vmax.f32 %v495, 1e-10
        %v502 = vlog2.pop %v497
        %v503 = vmul.f32 %v502, 0.6931472
        %v504 = vlog2.pop %v498
        %v505 = vmul.f32 %v504, 0.6931472
        %v506 = vlog2.pop %v499
        %v507 = vmul.f32 %v506, 0.6931472
        %v508 = vlog2.pop %v500
        %v509 = vmul.f32 %v508, 0.6931472
        %v510 = vlog2.pop %v501
        %v511 = vmul.f32 %v510, 0.6931472
        %v512 = vmul.f32 %v503, 0.4342945
        %v513 = vmul.f32 %v505, 0.4342945
        %v514 = vmul.f32 %v507, 0.4342945
        %v515 = vmul.f32 %v509, 0.4342945
        %v516 = vmul.f32 %v511, 0.4342945
        %v517 = vmul.f32 %v512, 10.0
        %v518 = vmul.f32 %v513, 10.0
        %v519 = vmul.f32 %v514, 10.0
        %v520 = vmul.f32 %v515, 10.0
        %v521 = vmul.f32 %v516, 10.0
        %v522 = vld [vmem:[%s3] sm:$0x1]
        %v524 = vperm.slane %v522, 0
        %v526 = vmul.f32 %v517, %v524
        %v527 = vmul.f32 %v518, %v524
        %v528 = vmul.f32 %v519, %v524
        %v529 = vmul.f32 %v520, %v524
        %v530 = vmul.f32 %v521, %v524
        %v531 = vld [vmem:[%s4] sm:$0x1]
        %v533 = vperm.slane %v531, 0
        %v535 = vadd.f32 %v526, %v533
        %v536 = vadd.f32 %v527, %v533
        %v537 = vadd.f32 %v528, %v533
        %v538 = vadd.f32 %v529, %v533
        %v539 = vadd.f32 %v530, %v533
        %540 = vst [vmem:[%s259] sm:$0xff] %v535
        %541 = vst [vmem:[%s259 + $0x8] sm:$0xff] %v536
        %542 = vst [vmem:[%s259 + $0x10] sm:$0xff] %v537
        %543 = vst [vmem:[%s259 + $0x18] sm:$0xff] %v538
        %544 = vst [vmem:[%s259 + $0x20] sm:$0xff] %v539
        %s545 = sadd.s32 %s21, %s22
        %s546 = smul.u32 5, %s545
        %p547 = scmp.lt.s32.totalorder %s546, 9
        %s548 = scalar_select %p547, %s546, 9
        %s549 = smul.addr %s548, 8
        %s550 = scalar_lea.vmem %s5, %s549
        // Predicated region
        $region45: #{_lambda_.1} parent=39 // pred_check
          %p551 = pneg %p159
        $region46: #{_lambda_.1} parent=39 // pred_check_branch
          %553 = sbr.rel (%p551) target = $region48
        $region47: #{_lambda_.1} parent=39 // pred_region
          %s554 = sadd.s32 %s21, %s22
          %s555 = smul.u32 5, %s554
        $region48: #{_lambda_.1} parent=39 // pred_fallthru
          _
      $region40: #{_lambda_.1} parent=5 // pred_fallthru
        _
      %p556 = scmp.le.s32.totalorder 2, %s12
      // Predicated region
      $region49: #{_lambda_.1} parent=5 // pred_check
        %p557 = pneg %p556
      $region50: #{_lambda_.1} parent=5 // pred_check_branch
        %559 = sbr.rel (%p557) target = $region52
      $region51: #{_lambda_.1} parent=5 // pred_region
        %s560 = ssub.s32 %s12, 2
        // Predicated region
        $region53: #{_lambda_.1} parent=51 // pred_check
          %p561 = pneg %p165
        $region54: #{_lambda_.1} parent=51 // pred_check_branch
          %563 = sbr.rel (%p561) target = $region56
        $region55: #{_lambda_.1} parent=51 // pred_region
          %s564 = sadd.s32 %s23, %s24
          %s565 = smul.u32 5, %s564
          %p566 = scmp.lt.s32.totalorder %s565, 9
          %s567 = scalar_select %p566, %s565, 9
          %s568 = smul.addr %s567, 8
          %s569 = scalar_lea.vmem %s5, %s568
        $region56: #{_lambda_.1} parent=51 // pred_fallthru
          _
      $region52: #{_lambda_.1} parent=5 // pred_fallthru
        _
    $region6: #{_lambda_.1} parent=1 // loop_footer
      %s16 = sadd.s32 1, %s12
    $region7: #{_lambda_.1} parent=1 // loop_footer_branch
      %11 = sbr.rel target = $region3
    $region8: #{_lambda_.1} parent=1 // loop_exit
      _
    %570 = vsyncpa [#allocation3], 1
    %s571 = scalar_lea.sflag [#allocation3], 1
    %572 = vsyncpa %s571, 1

</llo_original>
